<compile_context>
chip_gen: v7x
topology: tpu7x:2x2x1
jax: 0.10.0
libtpu: 0.0.40
codegen_flags: <defaults>
</compile_context>

<pallas_src>
import functools

import jax
import jax.numpy as jnp
from jax.experimental import pallas as pl
from jax.experimental.pallas import tpu as pltpu


def _focal_loss_kernel(logits_ref, targets_ref, out_ref, acc_ref, *,
                       gamma, n_rows, block_rows):
    i = pl.program_id(0)

    @pl.when(i == 0)
    def _init():
        acc_ref[...] = jnp.zeros_like(acc_ref)

    logits = logits_ref[...].astype(jnp.float32)       # [TN, C] (VPU upcast)
    tgt = targets_ref[...]                             # [TN, 1] int32
    tn, c = logits.shape

    # one-hot via iota-compare (no gather needed)
    cls_ids = jax.lax.broadcasted_iota(jnp.int32, (tn, c), 1)
    onehot = cls_ids == tgt                            # [TN, C] bool

    # per-row cross entropy: logsumexp(logits) - logits[target]
    m = jnp.max(logits, axis=-1, keepdims=True)        # [TN, 1]
    lse = jnp.log(jnp.sum(jnp.exp(logits - m), axis=-1, keepdims=True)) + m
    tgt_logit = jnp.sum(jnp.where(onehot, logits, 0.0), axis=-1, keepdims=True)
    ce_rows = lse - tgt_logit                          # [TN, 1]

    # Mask rows past the true batch size (only the last, partial tile can have
    # them).  jnp.where is a select, so garbage/NaN in masked rows cannot
    # contaminate the sum.  Statically skipped when the grid tiles exactly.
    if n_rows % block_rows != 0:
        row_ids = i * block_rows + jax.lax.broadcasted_iota(
            jnp.int32, (tn, 1), 0)
        ce_rows = jnp.where(row_ids < n_rows, ce_rows, 0.0)

    # running CE sum, resident in VMEM across the whole grid
    acc_ref[...] += jnp.sum(ce_rows, axis=0, keepdims=True)   # (1, 1)

    @pl.when(i == pl.num_programs(0) - 1)
    def _finalize():
        ce = acc_ref[...] * jnp.float32(1.0 / n_rows)          # (1,1) mean CE
        pt = jnp.exp(-ce)                                      # EUP
        one_minus_pt = 1.0 - pt
        g = float(gamma)
        if g == int(g) and 0 <= int(g) <= 8:
            # static unroll: avoids pow -> exp(g*log(.)) and its log(0) edge
            mod = jnp.ones_like(one_minus_pt)
            for _ in range(int(g)):
                mod = mod * one_minus_pt
        else:
            mod = one_minus_pt ** jnp.float32(g)
        out_ref[0, 0] = jnp.sum(mod * ce)                      # scalar -> SMEM


def _pick_block_rows(n, c, itemsize, *, max_rows=1024,
                     vmem_budget_bytes=8 * 1024 * 1024):
    """Rows per tile: multiple of 8, double-buffered logits tile <= budget."""
    rows_by_mem = max(8, vmem_budget_bytes // max(1, 2 * c * itemsize))
    tn = min(max_rows, rows_by_mem)
    tn = max(8, (tn // 8) * 8)
    if tn >= n:
        tn = n          # full-array block is always a legal block shape
    return tn


def focal_loss(logits, targets, gamma=2.0, *, block_rows=None):
    """logits: [N, C] float (native dtype), targets: [N] int -> scalar f32."""
    n, c = logits.shape
    targets2d = targets.astype(jnp.int32).reshape(n, 1)

    if block_rows is None:
        block_rows = _pick_block_rows(n, c, logits.dtype.itemsize)
    block_rows = min(int(block_rows), n)
    if block_rows < n:
        block_rows = max(8, (block_rows // 8) * 8)   # (8,128) tiling rule
    grid = (pl.cdiv(n, block_rows),)

    kernel = functools.partial(_focal_loss_kernel, gamma=gamma,
                               n_rows=n, block_rows=block_rows)

    out = pl.pallas_call(
        kernel,
        out_shape=jax.ShapeDtypeStruct((1, 1), jnp.float32),
        grid=grid,
        in_specs=[
            pl.BlockSpec((block_rows, c), lambda i: (i, 0)),   # logits tile
            pl.BlockSpec((block_rows, 1), lambda i: (i, 0)),   # targets tile
        ],
        out_specs=pl.BlockSpec(memory_space=pltpu.SMEM),        # scalar output
        scratch_shapes=[pltpu.VMEM((1, 1), jnp.float32)],       # CE-sum acc
        compiler_params=pltpu.CompilerParams(
            dimension_semantics=("arbitrary",)),                # reduction axis
    )(logits, targets2d)
    return out[0, 0]


def _focal_loss_ref(logits, targets, gamma=2.0):
    # pure-JAX reference (matches the torch module's semantics)
    logits = logits.astype(jnp.float32)
    lse = jax.nn.logsumexp(logits, axis=-1)
    tgt_logit = jnp.take_along_axis(
        logits, targets[:, None].astype(jnp.int32), axis=-1)[:, 0]
    ce = jnp.mean(lse - tgt_logit)
    pt = jnp.exp(-ce)
    return ((1.0 - pt) ** gamma) * ce


if __name__ == "__main__":
    # FocalLoss has no learnable parameters (weight=None, gamma=2, mean reduction).
    key = jax.random.PRNGKey(0)
    k1, k2 = jax.random.split(key)

    N, C = 20, 32                       # small shapes; N not a tile multiple
    logits_f32 = jax.random.normal(k1, (N, C), dtype=jnp.float32)
    targets = jax.random.randint(k2, (N,), 0, C, dtype=jnp.int32)

    # 1) f32 input, explicit small tile -> exercises multi-step grid + masking
    out = focal_loss(logits_f32, targets, gamma=2.0, block_rows=8)
    out = jax.block_until_ready(out)
    ref = _focal_loss_ref(logits_f32, targets, gamma=2.0)
    assert jnp.allclose(out, ref, rtol=1e-5, atol=1e-5), (out, ref)

    # 2) f32 input, auto-picked tile (single full block here)
    out2 = jax.block_until_ready(focal_loss(logits_f32, targets, gamma=2.0))
    assert jnp.allclose(out2, ref, rtol=1e-5, atol=1e-5), (out2, ref)

    # 3) bf16 input stays bf16 over HBM->VMEM; math still f32 in-kernel
    logits_bf16 = logits_f32.astype(jnp.bfloat16)
    out3 = jax.block_until_ready(
        focal_loss(logits_bf16, targets, gamma=2.0, block_rows=8))
    ref3 = _focal_loss_ref(logits_bf16, targets, gamma=2.0)
    assert jnp.allclose(out3, ref3, rtol=1e-5, atol=1e-5), (out3, ref3)

    # 4) non-integer gamma exercises the pow path
    out4 = jax.block_until_ready(focal_loss(logits_f32, targets, gamma=1.5))
    ref4 = _focal_loss_ref(logits_f32, targets, gamma=1.5)
    assert jnp.allclose(out4, ref4, rtol=1e-5, atol=1e-5), (out4, ref4)

    print("KERNEL_OK")
</pallas_src>

<mosaic_0001>
module attributes {stable_mosaic.version = 11 : i64} {
  func.func @_focal_loss_kernel(%arg0: i32, %arg1: memref<8x32xf32, #tpu.memory_space<vmem>>, %arg2: memref<8x1xi32, #tpu.memory_space<vmem>>, %arg3: memref<1x1xf32, #tpu.memory_space<smem>>, %arg4: memref<1x1xf32, #tpu.memory_space<vmem>>) attributes {dimension_semantics = [#tpu.dimension_semantics<arbitrary>], iteration_bounds = array<i64: 3>, scalar_prefetch = 0 : i64, scratch_operands = 1 : i64, tpu.core_type = #tpu.core_type<tc>, window_params = [{transform_indices = @transform_0, window_bounds = array<i64: 8, 32>}, {transform_indices = @transform_1, window_bounds = array<i64: 8, 1>}, {transform_indices = @transform_2, window_bounds = array<i64: 1, 1>}]} {
    %c0_i32 = arith.constant 0 : i32
    %0 = arith.cmpi eq, %arg0, %c0_i32 : i32
    %1 = arith.extui %0 : i1 to i32
    %c0_i32_0 = arith.constant 0 : i32
    %2 = arith.cmpi ne, %1, %c0_i32_0 : i32
    scf.if %2 {
      %cst_14 = arith.constant 0.000000e+00 : f32
      %38 = vector.broadcast %cst_14 : f32 to vector<1x1xf32>
      %c0_15 = arith.constant 0 : index
      %c0_16 = arith.constant 0 : index
      %39 = vector.load %arg4[%c0_15, %c0_16] : memref<1x1xf32, #tpu.memory_space<vmem>>, vector<1x1xf32>
      tpu.vector_store %arg4[%c0_15, %c0_16], %38 {strides = array<i32>} : memref<1x1xf32, #tpu.memory_space<vmem>>, vector<1x1xf32>,
    } else {
    }
    %c0 = arith.constant 0 : index
    %c0_1 = arith.constant 0 : index
    %3 = vector.load %arg1[%c0, %c0_1] : memref<8x32xf32, #tpu.memory_space<vmem>>, vector<8x32xf32>
    %c0_2 = arith.constant 0 : index
    %c0_3 = arith.constant 0 : index
    %4 = vector.load %arg2[%c0_2, %c0_3] : memref<8x1xi32, #tpu.memory_space<vmem>>, vector<8x1xi32>
    %5 = tpu.iota {dimensions = array<i32: 1>} : vector<8x32xi32>
    %6 = vector.broadcast %4 : vector<8x1xi32> to vector<8x32xi32>
    %7 = arith.cmpi eq, %5, %6 : vector<8x32xi32>
    %cst = arith.constant dense<0xFF800000> : vector<8xf32>
    %8 = vector.multi_reduction <maximumf>, %3, %cst [1] : vector<8x32xf32> to vector<8xf32>
    %9 = vector.shape_cast %8 : vector<8xf32> to vector<8x1xf32>
    %10 = vector.broadcast %9 : vector<8x1xf32> to vector<8x32xf32>
    %11 = arith.subf %3, %10 : vector<8x32xf32>
    %12 = math.exp %11 : vector<8x32xf32>
    %cst_4 = arith.constant dense<0.000000e+00> : vector<8xf32>
    %13 = vector.multi_reduction <add>, %12, %cst_4 [1] : vector<8x32xf32> to vector<8xf32>
    %14 = vector.shape_cast %13 : vector<8xf32> to vector<8x1xf32>
    %15 = math.log %14 : vector<8x1xf32>
    %16 = arith.addf %15, %9 : vector<8x1xf32>
    %cst_5 = arith.constant 0.000000e+00 : f32
    %17 = vector.broadcast %cst_5 : f32 to vector<8x32xf32>
    %18 = arith.select %7, %3, %17 : vector<8x32xi1>, vector<8x32xf32>
    %cst_6 = arith.constant dense<0.000000e+00> : vector<8xf32>
    %19 = vector.multi_reduction <add>, %18, %cst_6 [1] : vector<8x32xf32> to vector<8xf32>
    %20 = vector.shape_cast %19 : vector<8xf32> to vector<8x1xf32>
    %21 = arith.subf %16, %20 : vector<8x1xf32>
    %c8_i32 = arith.constant 8 : i32
    %22 = arith.muli %arg0, %c8_i32 : i32
    %23 = tpu.iota {dimensions = array<i32: 0>} : vector<8x1xi32>
    %24 = vector.broadcast %22 : i32 to vector<8x1xi32>
    %25 = arith.addi %24, %23 : vector<8x1xi32>
    %c20_i32 = arith.constant 20 : i32
    %26 = vector.broadcast %c20_i32 : i32 to vector<8x1xi32>
    %27 = arith.cmpi slt, %25, %26 : vector<8x1xi32>
    %cst_7 = arith.constant 0.000000e+00 : f32
    %28 = vector.broadcast %cst_7 : f32 to vector<8x1xf32>
    %29 = arith.select %27, %21, %28 : vector<8x1xi1>, vector<8x1xf32>
    %c0_8 = arith.constant 0 : index
    %c0_9 = arith.constant 0 : index
    %30 = vector.load %arg4[%c0_8, %c0_9] : memref<1x1xf32, #tpu.memory_space<vmem>>, vector<1x1xf32>
    %cst_10 = arith.constant dense<0.000000e+00> : vector<1xf32>
    %31 = vector.multi_reduction <add>, %29, %cst_10 [0] : vector<8x1xf32> to vector<1xf32>
    %32 = vector.shape_cast %31 : vector<1xf32> to vector<1x1xf32>
    %33 = arith.addf %30, %32 : vector<1x1xf32>
    %c0_11 = arith.constant 0 : index
    %c0_12 = arith.constant 0 : index
    %34 = vector.load %arg4[%c0_11, %c0_12] : memref<1x1xf32, #tpu.memory_space<vmem>>, vector<1x1xf32>
    tpu.vector_store %arg4[%c0_11, %c0_12], %33 {strides = array<i32>} : memref<1x1xf32, #tpu.memory_space<vmem>>, vector<1x1xf32>,
    %c2_i32 = arith.constant 2 : i32
    %35 = arith.cmpi eq, %arg0, %c2_i32 : i32
    %36 = arith.extui %35 : i1 to i32
    %c0_i32_13 = arith.constant 0 : i32
    %37 = arith.cmpi ne, %36, %c0_i32_13 : i32
    scf.if %37 {
      %c0_14 = arith.constant 0 : index
      %c0_15 = arith.constant 0 : index
      %38 = vector.load %arg4[%c0_14, %c0_15] : memref<1x1xf32, #tpu.memory_space<vmem>>, vector<1x1xf32>
      %cst_16 = arith.constant 5.000000e-02 : f32
      %39 = vector.broadcast %cst_16 : f32 to vector<1x1xf32>
      %40 = arith.mulf %38, %39 : vector<1x1xf32>
      %cst_17 = arith.constant 0.000000e+00 : f32
      %41 = vector.broadcast %cst_17 : f32 to vector<1x1xf32>
      %42 = arith.subf %41, %40 : vector<1x1xf32>
      %43 = math.exp %42 : vector<1x1xf32>
      %cst_18 = arith.constant 1.000000e+00 : f32
      %44 = vector.broadcast %cst_18 : f32 to vector<1x1xf32>
      %45 = arith.subf %44, %43 : vector<1x1xf32>
      %cst_19 = arith.constant 1.000000e+00 : f32
      %46 = vector.broadcast %cst_19 : f32 to vector<1x1xf32>
      %47 = arith.mulf %46, %45 : vector<1x1xf32>
      %48 = arith.mulf %47, %45 : vector<1x1xf32>
      %49 = arith.mulf %48, %40 : vector<1x1xf32>
      %50 = vector.shape_cast %49 : vector<1x1xf32> to vector<1x1x1xf32>
      %cst_20 = arith.constant dense<0.000000e+00> : vector<1xf32>
      %51 = vector.multi_reduction <add>, %50, %cst_20 [1, 2] : vector<1x1x1xf32> to vector<1xf32>
      %52 = vector.shape_cast %51 : vector<1xf32> to vector<1x1x1xf32>
      %53 = vector.extract %52[0, 0, 0] : f32 from vector<1x1x1xf32>
      %c0_21 = arith.constant 0 : index
      %c0_22 = arith.constant 0 : index
      %54 = memref.load %arg3[%c0_21, %c0_22] : memref<1x1xf32, #tpu.memory_space<smem>>
      memref.store %53, %arg3[%c0_21, %c0_22] : memref<1x1xf32, #tpu.memory_space<smem>>
    } else {
    }
    return
  }
  func.func @transform_0(%arg0: i32) -> (i32, i32) {
    %c0_i32 = arith.constant 0 : i32
    %c0_i32_0 = arith.constant 0 : i32
    return %arg0, %c0_i32 : i32, i32
  }
  func.func @transform_1(%arg0: i32) -> (i32, i32) {
    %c0_i32 = arith.constant 0 : i32
    %c0_i32_0 = arith.constant 0 : i32
    return %arg0, %c0_i32 : i32, i32
  }
  func.func @transform_2(%arg0: i32) -> (i32, i32) {
    %c0_i32 = arith.constant 0 : i32
    %c0_i32_0 = arith.constant 0 : i32
    %c0_i32_1 = arith.constant 0 : i32
    return %c0_i32, %c0_i32_0 : i32, i32
  }
}

</mosaic_0001>

<llo_original>
// kernel: tpu_custom_call.1
$region0: #{tpu_custom_call.1}
  #allocation0 [shape = 'u32[]', space=smem, size = 0x4, offset = 0x4, fixed_abs, tag = 'smem constant byte address 0x4 - core index']
  #allocation1 [shape = 'u32[144,128]{1,0:T(1,128)}', space=vmem, size = 0x12000, scoped, tag = 'internal scratch']
  #allocation2 [shape = 'f32[1,1]{1,0:T(1,128)}', space=vmem, size = 0x200, scoped, tag = 'scratch operand']
  %s0 = inlined_call_operand.vmem [shape: f32[20,32], index: 0, kind: input, shape index: {}]
  %s1 = inlined_call_operand.vmem [shape: s32[20,1], index: 1, kind: input, shape index: {}]
  %s2 = inlined_call_operand.hbm [shape: f32[1,1], index: 2, kind: output, shape index: {}]
  %s3 = sld [smem:[#allocation0]]
  $region49: #{tpu_custom_call.1} parent=0
    _
  %s5 = ssub.s32 1, %s3
  %s6 = scalar_select 0, %s5, %s3
  $region1: #{tpu_custom_call.1} parent=0
    #allocation3 [shape = 'u8[512]{0}', space=smem, size = 0x200, scoped, tag = 'output window, operand 0, single buffered']
    #allocation4 [shape = 's32[2]{0}', space=sflag, size = 0x8, scoped, tag = 'scoped memory for tpu_custom_call.1']
    %7 = vsyncpa [#allocation4], 0
    loop: start=0, step=1, limit=5
    $region2: #{tpu_custom_call.1} parent=1 // loop_pre_header
      _
    $region3: #{tpu_custom_call.1} parent=1 // loop_header
      %s9 = sphi 0, %s13
      %p10 = scmp.ge.s32.totalorder %s9, 5
      %s19 = sphi 0, %s21
      %s22 = sphi 0, %s19
      %s23 = sphi 0, %s22
      %s39 = sphi 0, %s23
      %s45 = sphi 0, %s47
      %s48 = sphi 0, %s45
      %s49 = sphi 0, %s48
      %s65 = sphi 0, %s49
      %s69 = sphi 0, %s69
      %s71 = sphi 0, %s69
      %s72 = sphi 0, %s71
      %s86 = sphi 0, %s72
    $region4: #{tpu_custom_call.1} parent=1 // loop_header_branch
      %12 = sbr.rel (%p10) target = $region8
    $region5: #{tpu_custom_call.1} parent=1 // loop_body
      %s14 = ssub.s32 %s9, 1
      %s15 = ssub.s32 %s9, 2
      %s16 = sadd.s32 %s9, 1
      %s17 = ssub.s32 %s9, %s16
      %p18 = scmp.eq.s32.totalorder %s17, 0
      %s20 = sadd.s32 %s19, 1
      %s21 = scalar_select %p18, %s19, %s20
      %p24 = pneg %p18
      %p25 = scmp.eq.s32.totalorder %s9, 2
      %p26 = por %p24, %p25
      %p27 = scmp.ne.s32.totalorder %s19, %s22
      %p28 = scmp.eq.s32.totalorder %s9, 0
      %p29 = por %p27, %p28
      %p30 = scmp.ne.s32.totalorder %s19, %s22
      %p31 = scmp.eq.s32.totalorder %s14, 2
      %p32 = por %p30, %p31
      %p33 = scmp.ne.s32.totalorder %s22, %s23
      %p34 = scmp.eq.s32.totalorder %s14, 0
      %p35 = por %p33, %p34
      %p36 = scmp.ne.s32.totalorder %s22, %s23
      %p37 = scmp.eq.s32.totalorder %s15, 2
      %p38 = por %p36, %p37
      %p40 = scmp.ne.s32.totalorder %s23, %s39
      %p41 = scmp.eq.s32.totalorder %s15, 0
      %p42 = por %p40, %p41
      %s43 = ssub.s32 %s9, %s16
      %p44 = scmp.eq.s32.totalorder %s43, 0
      %s46 = sadd.s32 %s45, 1
      %s47 = scalar_select %p44, %s45, %s46
      %p50 = pneg %p44
      %p51 = scmp.eq.s32.totalorder %s9, 2
      %p52 = por %p50, %p51
      %p53 = scmp.ne.s32.totalorder %s45, %s48
      %p54 = scmp.eq.s32.totalorder %s9, 0
      %p55 = por %p53, %p54
      %p56 = scmp.ne.s32.totalorder %s45, %s48
      %p57 = scmp.eq.s32.totalorder %s14, 2
      %p58 = por %p56, %p57
      %p59 = scmp.ne.s32.totalorder %s48, %s49
      %p60 = scmp.eq.s32.totalorder %s14, 0
      %p61 = por %p59, %p60
      %p62 = scmp.ne.s32.totalorder %s48, %s49
      %p63 = scmp.eq.s32.totalorder %s15, 2
      %p64 = por %p62, %p63
      %p66 = scmp.ne.s32.totalorder %s49, %s65
      %p67 = scmp.eq.s32.totalorder %s15, 0
      %p68 = por %p66, %p67
      %s70 = sadd.s32 %s69, 1
      %p73 = scmp.eq.s32.totalorder %s9, 2
      %p74 = scmp.ne.s32.totalorder %s69, %s71
      %p75 = scmp.eq.s32.totalorder %s9, 0
      %p76 = por %p74, %p75
      %p77 = scmp.ne.s32.totalorder %s69, %s71
      %p78 = scmp.eq.s32.totalorder %s14, 2
      %p79 = por %p77, %p78
      %p80 = scmp.ne.s32.totalorder %s71, %s72
      %p81 = scmp.eq.s32.totalorder %s14, 0
      %p82 = por %p80, %p81
      %p83 = scmp.ne.s32.totalorder %s71, %s72
      %p84 = scmp.eq.s32.totalorder %s15, 2
      %p85 = por %p83, %p84
      %p87 = scmp.ne.s32.totalorder %s72, %s86
      %p88 = scmp.eq.s32.totalorder %s15, 0
      %p89 = por %p87, %p88
      %p90 = scmp.le.s32.totalorder 1, %s9
      %p91 = scmp.lt.s32.totalorder %s9, 4
      %p92 = pnand %p90, %p91
      %p93 = pneg %p92
      // Predicated region
      $region9: #{tpu_custom_call.1} parent=5 // pred_check
        _
      $region10: #{tpu_custom_call.1} parent=5 // pred_check_branch
        %95 = sbr.rel (%p92) target = $region12
      $region11: #{tpu_custom_call.1} parent=5 // pred_region
        %s96 = ssub.s32 %s9, 1
      $region12: #{tpu_custom_call.1} parent=5 // pred_fallthru
        _
      %p97 = scmp.lt.s32.totalorder %s9, 3
      // Predicated region
      $region13: #{tpu_custom_call.1} parent=5 // pred_check
        %p98 = pneg %p97
      $region14: #{tpu_custom_call.1} parent=5 // pred_check_branch
        %100 = sbr.rel (%p98) target = $region16
      $region15: #{tpu_custom_call.1} parent=5 // pred_region
        // Predicated region
        $region17: #{tpu_custom_call.1} parent=15 // pred_check
          %p101 = pneg %p29
        $region18: #{tpu_custom_call.1} parent=15 // pred_check_branch
          %103 = sbr.rel (%p101) target = $region20
        $region19: #{tpu_custom_call.1} parent=15 // pred_region
          %p104 = scmp.lt.s32.totalorder %s9, 2
          %s105 = scalar_select %p104, %s9, 2
          %s106 = smul.addr %s105, 8
          %s107 = scalar_lea.vmem %s0, %s106
        $region20: #{tpu_custom_call.1} parent=15 // pred_fallthru
          _
        // Predicated region
        $region21: #{tpu_custom_call.1} parent=15 // pred_check
          %p108 = pneg %p55
        $region22: #{tpu_custom_call.1} parent=15 // pred_check_branch
          %110 = sbr.rel (%p108) target = $region24
        $region23: #{tpu_custom_call.1} parent=15 // pred_region
          %p111 = scmp.lt.s32.totalorder %s9, 2
          %s112 = scalar_select %p111, %s9, 2
          %s113 = smul.addr %s112, 8
          %s114 = scalar_lea.vmem %s1, %s113
        $region24: #{tpu_custom_call.1} parent=15 // pred_fallthru
          _
      $region16: #{tpu_custom_call.1} parent=5 // pred_fallthru
        _
      %p115 = scmp.le.s32.totalorder 1, %s9
      %p116 = scmp.lt.s32.totalorder %s9, 4
      %p117 = pnand %p115, %p116
      %p118 = pneg %p117
      // Predicated region
      $region25: #{tpu_custom_call.1} parent=5 // pred_check
        _
      $region26: #{tpu_custom_call.1} parent=5 // pred_check_branch
        %120 = sbr.rel (%p117) target = $region28
      $region27: #{tpu_custom_call.1} parent=5 // pred_region
        %s121 = ssub.s32 %s9, 1
        %p122 = scmp.lt.s32.totalorder %s14, 2
        %s123 = scalar_select %p122, %s14, 2
        %s124 = smul.addr %s123, 8
        %s125 = scalar_lea.vmem %s0, %s124
        %p126 = pneg %p35
        %p127 = pneg %p32
        %p128 = scmp.lt.s32.totalorder %s14, 2
        %s129 = scalar_select %p128, %s14, 2
        %s130 = smul.addr %s129, 8
        %s131 = scalar_lea.vmem %s1, %s130
        %p132 = pneg %p61
        %p133 = pneg %p58
        %p134 = pneg %p82
        %p135 = pneg %p79
        %p136 = scmp.lt.s32.totalorder %s14, 2
        %s137 = scalar_select %p136, %s14, 2
        %s138 = smul.addr %s137, 8
        %s139 = scalar_lea.vmem %s0, %s138
        %p140 = scmp.lt.s32.totalorder %s14, 2
        %s141 = scalar_select %p140, %s14, 2
        %s142 = smul.addr %s141, 8
        %s143 = scalar_lea.vmem %s1, %s142
        %p144 = scmp.eq.s32.totalorder %s14, 0
        // Predicated region
        $region29: #{tpu_custom_call.1} parent=27 // pred_check
          %p145 = pneg %p144
        $region30: #{tpu_custom_call.1} parent=27 // pred_check_branch
          %147 = sbr.rel (%p145) target = $region32
        $region31: #{tpu_custom_call.1} parent=27 // pred_region
          %vm148 = vcmask 0
          %149 = vst.msk [vmem:[#allocation2] sm:$0x1] %vm148, 0.0
        $region32: #{tpu_custom_call.1} parent=27 // pred_fallthru
          _
        %v150 = vld [vmem:[%s139] sm:$0xff]
        %v151 = vld [vmem:[%s143] sm:$0xff]
        %v152 = vlaneseq
        %v153 = vand.u32 %v152, 127
        %154 = vset.pattern.permute.xlu0 0
        %155 = vperm.xlu0 %154, %v151
        %v156 = vpop.permute.xlu0 %155
        %vm157 = vcmp.eq.s32.totalorder %v153, %v156
        %vm158 = vcmask 261120
        %v159 = vsel %vm158, %v150, -inf
        %160 = vmax.xlane.f32.xlu0 %v159
        %v161 = vpop.xlane.xlu0 %160
        %v162 = vsub.f32 %v150, %v161
        %v163 = vmul.f32 %v162, 1.442695
        %v164 = vpow.pop %v163
        %v165 = vsel %vm158, %v164, 0.0
        %166 = vadd.xlane.f32.xlu0 %v165
        %v167 = vpop.xlane.xlu0 %166
        %v168 = vlog2.pop %v167
        %v169 = vmul.f32 %v168, 0.6931472
        %v170 = vadd.f32 %v169, %v161
        %v171 = vsel %vm157, %v150, 0.0
        %v172 = vsel %vm158, %v171, 0.0
        %173 = vadd.xlane.f32.xlu0 %v172
        %v174 = vpop.xlane.xlu0 %173
        %v175 = vsub.f32 %v170, %v174
        %s176 = smul.u32 %s14, 8
        %v177 = vlaneseq
        %v178 = vshrl.u32 %v177, 7
        %v179 = vstv %s176
        %v180 = vadd.s32 %v179, %v178
        %vm181 = vcmp.lt.s32.totalorder %v180, 20
        %v182 = vsel %vm181, %v175, 0.0
        %v183 = vld [vmem:[#allocation2] sm:$0x1]
        %v184 = vrot.slane %v182, 4
        %v185 = vadd.f32 %v182, %v184
        %v186 = vrot.slane %v185, 2
        %v187 = vadd.f32 %v185, %v186
        %v188 = vrot.slane %v187, 1
        %v189 = vadd.f32 %v187, %v188
        %v190 = vadd.f32 %v183, %v189
        %vm191 = vcmask 0
        %192 = vst.msk [vmem:[#allocation2] sm:$0x1] %vm191, %v190
        %p193 = scmp.eq.s32.totalorder %s14, 2
        // Predicated region
        $region33: #{tpu_custom_call.1} parent=27 // pred_check
          %p194 = pneg %p193
        $region34: #{tpu_custom_call.1} parent=27 // pred_check_branch
          %196 = sbr.rel (%p194) target = $region36
        $region35: #{tpu_custom_call.1} parent=27 // pred_region
          %v197 = vld [vmem:[#allocation2] sm:$0x1]
          %v198 = vmul.f32 %v197, 0.05
          %v199 = vsub.f32 0.0, %v198
          %v200 = vmul.f32 %v199, 1.442695
          %v201 = vpow.pop %v200
          %v202 = vsub.f32 1.0, %v201
          %v203 = vmul.f32 %v202, %v202
          %v204 = vmul.f32 %v203, %v198
          %v205 = vadd.f32 %v204, 0.0
          %s206 = vtos %v205
          %s207 = scalar_lea.smem [#allocation3], 0
          %208 = sst [smem:[%s207]] %s206
        $region36: #{tpu_custom_call.1} parent=27 // pred_fallthru
          _
        // Predicated region
        $region37: #{tpu_custom_call.1} parent=27 // pred_check
          %p209 = pneg %p79
        $region38: #{tpu_custom_call.1} parent=27 // pred_check_branch
          %211 = sbr.rel (%p209) target = $region40
        $region39: #{tpu_custom_call.1} parent=27 // pred_region
          %s213 = ssub.s32 16, 16
          %214 = vsyncadd [#allocation4], %s213
          %217 = dma.smem_to_hbm [#allocation3], 16, %s2, [#allocation4]
        $region40: #{tpu_custom_call.1} parent=27 // pred_fallthru
          _
        // Predicated region
        $region41: #{tpu_custom_call.1} parent=27 // pred_check
          %p218 = pneg %p79
        $region42: #{tpu_custom_call.1} parent=27 // pred_check_branch
          %220 = sbr.rel (%p218) target = $region44
        $region43: #{tpu_custom_call.1} parent=27 // pred_region
          %221 = dma.done [#allocation4], 16
        $region44: #{tpu_custom_call.1} parent=27 // pred_fallthru
          _
        %222 = sfence
      $region28: #{tpu_custom_call.1} parent=5 // pred_fallthru
        _
      %p223 = scmp.le.s32.totalorder 2, %s9
      // Predicated region
      $region45: #{tpu_custom_call.1} parent=5 // pred_check
        %p224 = pneg %p223
      $region46: #{tpu_custom_call.1} parent=5 // pred_check_branch
        %226 = sbr.rel (%p224) target = $region48
      $region47: #{tpu_custom_call.1} parent=5 // pred_region
        %s227 = ssub.s32 %s9, 2
      $region48: #{tpu_custom_call.1} parent=5 // pred_fallthru
        _
    $region6: #{tpu_custom_call.1} parent=1 // loop_footer
      %s13 = sadd.s32 1, %s9
    $region7: #{tpu_custom_call.1} parent=1 // loop_footer_branch
      %8 = sbr.rel target = $region3
    $region8: #{tpu_custom_call.1} parent=1 // loop_exit
      _
    %228 = vsyncpa [#allocation4], 1
    %s229 = scalar_lea.sflag [#allocation4], 1
    %230 = vsyncpa %s229, 1

</llo_original>
